<compile_context>
chip_gen: v7x
topology: tpu7x:2x2x1
jax: 0.10.0
libtpu: 0.0.40
codegen_flags: <defaults>
</compile_context>

<pallas_src>
import functools
import math

import jax
import jax.numpy as jnp
import numpy as np
from jax.experimental import pallas as pl
from jax.experimental.pallas import tpu as pltpu

EPS = 1e-5
_SQRT_2_OVER_PI = math.sqrt(2.0 / math.pi)


def _gelu_tanh(x):
    # tanh-form GELU: the transcendental runs on the EUP slot (nearly free)
    # instead of a long VALU polynomial.
    return 0.5 * x * (1.0 + jnp.tanh(_SQRT_2_OVER_PI * (x + 0.044715 * (x * x * x))))


# ----------------------------------------------------------------------------
# Path A: fully fused kernel, one (Bb, N, C) block per grid step
# ----------------------------------------------------------------------------
def _biattn_fused_kernel(x_ref, pc_ref, pr_ref, wcat_ref, wc_ref, out_ref):
    Bb, N, C = x_ref.shape
    Rp = wc_ref.shape[0]
    M = Bb * N

    x3 = x_ref[...].astype(jnp.float32)                        # (Bb, N, C)
    x2 = x3.reshape(M, C)                                      # free (N%8==0 or Bb==1)

    # packed parameters
    nw, nb, bc = pc_ref[0:1, :], pc_ref[1:2, :], pc_ref[2:3, :]    # (1, C) each
    bl, bg = pr_ref[0:1, :], pr_ref[1:2, :]                        # (1, Rp)
    wsl, wsg = pr_ref[2:3, :], pr_ref[3:4, :]                      # (1, Rp)
    bs_row = pr_ref[4:5, :]                                        # (1, Rp): [bs, 0, ...]

    # --- LayerNorm over channels (two-pass variance; block is resident) ---
    mean = jnp.mean(x2, axis=-1, keepdims=True)
    xc = x2 - mean
    var = jnp.mean(xc * xc, axis=-1, keepdims=True)
    xn = xc * jax.lax.rsqrt(var + EPS) * nw + nb                   # (M, C) f32

    # --- fused local/global reduce: one bf16 MXU call against [Wl^T | Wg^T];
    #     the Rp=128-aligned packing makes the y split lane-aligned ---
    y = jnp.dot(xn.astype(jnp.bfloat16), wcat_ref[...],
                preferred_element_type=jnp.float32)                # (M, 2Rp) f32
    xl_r = _gelu_tanh(y[:, :Rp] + bl)                              # (M, Rp)
    # mean_tokens(xn) @ Wg == mean_tokens(xn @ Wg)  (linearity) -> reuse y
    yg = y[:, Rp:].reshape(Bb, N, Rp)
    xg_r = _gelu_tanh(jnp.sum(yg, axis=1) * (1.0 / N) + bg)        # (Bb, Rp)

    # --- channel attention (per-channel gate, shared over tokens), bf16 MXU ---
    c_attn = jax.nn.sigmoid(
        jnp.dot(xg_r.astype(jnp.bfloat16), wc_ref[...],
                preferred_element_type=jnp.float32) + bc)          # (Bb, C)

    # --- spatial attention; cat([local, global]) @ Ws^T split into two partial
    #     sums (no concat); scalar bias folded into bs_row = [bs, 0, ...] ---
    s_loc = jnp.sum(xl_r * wsl, axis=-1, keepdims=True)            # (M, 1)
    s_glob = jnp.sum(xg_r * wsg + bs_row, axis=-1, keepdims=True)  # (Bb, 1)
    s_attn = jax.nn.sigmoid(s_loc.reshape(Bb, N, 1) + s_glob.reshape(Bb, 1, 1))

    attn = c_attn.reshape(Bb, 1, C) * s_attn                       # (Bb, N, C)
    out_ref[...] = (x3 * attn).astype(out_ref.dtype)


# ----------------------------------------------------------------------------
# Path B: token-tiled two-pass path (for blocks that exceed the VMEM budget)
# ----------------------------------------------------------------------------
def _biattn_stats_kernel(x_ref, pc_ref, pr_ref, wcat_ref, sloc_ref, ysum_ref):
    t = pl.program_id(1)
    _, Nt, C = x_ref.shape
    Rp = ysum_ref.shape[2]

    x2 = x_ref[...].astype(jnp.float32).reshape(Nt, C)             # Bb=1 squeeze: free
    nw, nb = pc_ref[0:1, :], pc_ref[1:2, :]
    bl, wsl = pr_ref[0:1, :], pr_ref[2:3, :]

    mean = jnp.mean(x2, axis=-1, keepdims=True)
    xc = x2 - mean
    var = jnp.mean(xc * xc, axis=-1, keepdims=True)
    xn = xc * jax.lax.rsqrt(var + EPS) * nw + nb                   # (Nt, C)

    y = jnp.dot(xn.astype(jnp.bfloat16), wcat_ref[...],
                preferred_element_type=jnp.float32)                # (Nt, 2Rp)
    xl_r = _gelu_tanh(y[:, :Rp] + bl)
    sloc_ref[...] = jnp.sum(xl_r * wsl, axis=-1,
                            keepdims=True).reshape(1, Nt, 1)

    @pl.when(t == 0)
    def _():
        ysum_ref[...] = jnp.zeros_like(ysum_ref)

    ysum_ref[...] += jnp.sum(y[:, Rp:], axis=0,
                             keepdims=True).reshape(1, 1, Rp)


def _biattn_apply_kernel(x_ref, sloc_ref, ysum_ref, pc_ref, pr_ref, wc_ref,
                         out_ref, *, inv_n):
    _, Nt, C = x_ref.shape
    Rp = ysum_ref.shape[2]

    x3 = x_ref[...].astype(jnp.float32)                            # (1, Nt, C)
    bc = pc_ref[2:3, :]
    bg, wsg, bs_row = pr_ref[1:2, :], pr_ref[3:4, :], pr_ref[4:5, :]

    xg_r = _gelu_tanh(ysum_ref[...].reshape(1, Rp) * inv_n + bg)   # (1, Rp)
    c_attn = jax.nn.sigmoid(
        jnp.dot(xg_r.astype(jnp.bfloat16), wc_ref[...],
                preferred_element_type=jnp.float32) + bc)          # (1, C)
    s_glob = jnp.sum(xg_r * wsg + bs_row, axis=-1, keepdims=True)  # (1, 1)
    s_loc = sloc_ref[...].reshape(Nt, 1)
    s_attn = jax.nn.sigmoid(s_loc + s_glob)                        # (Nt, 1)

    attn = c_attn.reshape(1, 1, C) * s_attn.reshape(1, Nt, 1)
    out_ref[...] = (x3 * attn).astype(out_ref.dtype)


# ----------------------------------------------------------------------------
# Generation-aware configuration + block-size selection
# ----------------------------------------------------------------------------
def _hw_profile():
    kind = ""
    try:
        kind = jax.devices()[0].device_kind.lower()
    except Exception:
        pass
    vmem_cap = None
    try:
        vmem_cap = int(pltpu.get_tpu_info().vmem_capacity_bytes)
    except Exception:
        vmem_cap = None
    if vmem_cap is None or vmem_cap <= 0:
        vmem_cap = (64 << 20) if "v7" in kind else (128 << 20)

    small_vmem_two_tc = ("v7" in kind) or (vmem_cap <= (64 << 20))
    if small_vmem_two_tc:
        # v7x-like: 64 MiB VMEM, 2 TensorCores -> modest blocks, keep >= 2 steps
        target = int(2.5 * (1 << 20))
        limit = min(32 << 20, (vmem_cap * 3) // 4)
        cores = 2
    else:
        # v5e / v6e: 128 MiB VMEM, single TC -> bigger blocks, higher limit
        target = 8 << 20
        limit = min(64 << 20, (vmem_cap * 3) // 4)
        cores = 1
    return dict(target_block_bytes=target, vmem_limit_bytes=int(limit),
                num_cores=cores)


def _choose_block_batch(B, N, C, target_block_bytes, num_cores):
    """Pick Bb (divisor of B) for the fused path, or None -> token-tiled path."""
    if N % 8 != 0:
        # Bb=1 keeps the (Bb*N, C) merge a free squeeze (no VMEM relayout).
        return 1 if N * C * 4 <= target_block_bytes else None
    divisors = [d for d in range(1, B + 1) if B % d == 0]
    fits = [d for d in divisors if d * N * C * 4 <= target_block_bytes]
    if not fits:
        return None
    if num_cores >= 2 and B >= num_cores:
        even = [d for d in fits if (B // d) % num_cores == 0]
        if even:
            return max(even)
    return max(fits)


def _choose_token_tile(N, C, target_block_bytes):
    cands = [d for d in range(1, N + 1) if N % d == 0 and (d % 8 == 0 or d == N)]
    fits = [d for d in cands if d * C * 4 <= target_block_bytes]
    if fits:
        return max(fits)
    return min(cands)


# ----------------------------------------------------------------------------
# Wrapper: parameter packing + pallas_call
# ----------------------------------------------------------------------------
def super_biattn_forward(x, p, *, force_token_tiled=False, token_tile=None):
    B, N, C = x.shape
    R = p["wg"].shape[0]
    Rp = max(128, ((R + 127) // 128) * 128)   # lane-aligned padded reduce dim
    prof = _hw_profile()

    def pad_r(v):
        v = v.astype(jnp.float32)
        return v if Rp == R else jnp.concatenate(
            [v, jnp.zeros((Rp - R,), jnp.float32)])

    # consolidated parameter operands (few operands -> less DMA bookkeeping)
    pc = jnp.stack([p["norm_w"].astype(jnp.float32),
                    p["norm_b"].astype(jnp.float32),
                    p["bc"].astype(jnp.float32)], axis=0)              # (3, C)
    bs_row = jnp.zeros((Rp,), jnp.float32).at[0].set(p["bs"].reshape(-1)[0])
    pr = jnp.stack([pad_r(p["bl"]), pad_r(p["bg"]),
                    pad_r(p["ws"][0, :R]), pad_r(p["ws"][0, R:]),
                    bs_row], axis=0)                                   # (5, Rp)
    # [Wl^T | Wg^T] packed lane-aligned into (C, 2*Rp); padded columns are zero
    w_cat = (jnp.zeros((C, 2 * Rp), jnp.float32)
             .at[:, :R].set(p["wl"].T)
             .at[:, Rp:Rp + R].set(p["wg"].T)).astype(jnp.bfloat16)
    # Wc^T padded to (Rp, C), bf16 (padded rows are zero)
    wc_pad = (jnp.zeros((Rp, C), jnp.float32)
              .at[:R, :].set(p["wc"].T)).astype(jnp.bfloat16)

    Bb = None if force_token_tiled else _choose_block_batch(
        B, N, C, prof["target_block_bytes"], prof["num_cores"])

    if Bb is not None:
        # ------------------------- fused single-call path -------------------
        grid = (B // Bb,)
        return pl.pallas_call(
            _biattn_fused_kernel,
            out_shape=jax.ShapeDtypeStruct((B, N, C), x.dtype),
            grid=grid,
            in_specs=[
                pl.BlockSpec((Bb, N, C), lambda b: (b, 0, 0)),    # x
                pl.BlockSpec((3, C), lambda b: (0, 0)),           # norm_w/b, bc
                pl.BlockSpec((5, Rp), lambda b: (0, 0)),          # bl,bg,wsl,wsg,bs
                pl.BlockSpec((C, 2 * Rp), lambda b: (0, 0)),      # [Wl^T | Wg^T]
                pl.BlockSpec((Rp, C), lambda b: (0, 0)),          # Wc^T
            ],
            out_specs=pl.BlockSpec((Bb, N, C), lambda b: (b, 0, 0)),
            compiler_params=pltpu.CompilerParams(
                dimension_semantics=("parallel",),
                vmem_limit_bytes=prof["vmem_limit_bytes"]),
        )(x, pc, pr, w_cat, wc_pad)

    # ---------------------------- token-tiled path ---------------------------
    if token_tile is not None and N % token_tile == 0:
        Nt = token_tile
    else:
        Nt = _choose_token_tile(N, C, prof["target_block_bytes"])
    T = N // Nt

    # pass 1: per-token s_loc + accumulated global-reduce sum (token axis last)
    s_loc, y_sum = pl.pallas_call(
        _biattn_stats_kernel,
        out_shape=(jax.ShapeDtypeStruct((B, N, 1), jnp.float32),
                   jax.ShapeDtypeStruct((B, 1, Rp), jnp.float32)),
        grid=(B, T),
        in_specs=[
            pl.BlockSpec((1, Nt, C), lambda b, t: (b, t, 0)),
            pl.BlockSpec((3, C), lambda b, t: (0, 0)),
            pl.BlockSpec((5, Rp), lambda b, t: (0, 0)),
            pl.BlockSpec((C, 2 * Rp), lambda b, t: (0, 0)),
        ],
        out_specs=(pl.BlockSpec((1, Nt, 1), lambda b, t: (b, t, 0)),
                   pl.BlockSpec((1, 1, Rp), lambda b, t: (b, 0, 0))),
        compiler_params=pltpu.CompilerParams(
            dimension_semantics=("parallel", "arbitrary"),
            vmem_limit_bytes=prof["vmem_limit_bytes"]),
    )(x, pc, pr, w_cat)

    # pass 2: re-read x tiles (+0.5x HBM traffic) and apply the fused gate
    return pl.pallas_call(
        functools.partial(_biattn_apply_kernel, inv_n=1.0 / N),
        out_shape=jax.ShapeDtypeStruct((B, N, C), x.dtype),
        grid=(B, T),
        in_specs=[
            pl.BlockSpec((1, Nt, C), lambda b, t: (b, t, 0)),     # x
            pl.BlockSpec((1, Nt, 1), lambda b, t: (b, t, 0)),     # s_loc
            pl.BlockSpec((1, 1, Rp), lambda b, t: (b, 0, 0)),     # y_sum
            pl.BlockSpec((3, C), lambda b, t: (0, 0)),
            pl.BlockSpec((5, Rp), lambda b, t: (0, 0)),
            pl.BlockSpec((Rp, C), lambda b, t: (0, 0)),
        ],
        out_specs=pl.BlockSpec((1, Nt, C), lambda b, t: (b, t, 0)),
        compiler_params=pltpu.CompilerParams(
            dimension_semantics=("parallel", "parallel"),
            vmem_limit_bytes=prof["vmem_limit_bytes"]),
    )(x, s_loc, y_sum, pc, pr, wc_pad)


# ----------------------------------------------------------------------------
# Pure-JAX reference (mirrors the PyTorch forward literally: exact-erf GELU)
# ----------------------------------------------------------------------------
def super_biattn_reference(x, p):
    mean = jnp.mean(x, axis=-1, keepdims=True)
    xc = x - mean
    var = jnp.mean(xc * xc, axis=-1, keepdims=True)
    xn = xc / jnp.sqrt(var + EPS) * p["norm_w"] + p["norm_b"]

    def gelu(v):
        return 0.5 * v * (1.0 + jax.scipy.special.erf(v / math.sqrt(2.0)))

    xg = jnp.mean(xn, axis=1, keepdims=True)
    xg_r = gelu(xg @ p["wg"].T + p["bg"])
    xl_r = gelu(xn @ p["wl"].T + p["bl"])
    c_attn = jax.nn.sigmoid(xg_r @ p["wc"].T + p["bc"])
    cat = jnp.concatenate([xl_r, jnp.broadcast_to(xg_r, xl_r.shape)], axis=-1)
    s_attn = jax.nn.sigmoid(cat @ p["ws"].T + p["bs"])
    return x * (c_attn * s_attn)


# ----------------------------------------------------------------------------
# Deterministic parameter init (kaiming_uniform(a=sqrt(5)) => U(-1/sqrt(fan_in), ..))
# ----------------------------------------------------------------------------
def init_params(key, C, R):
    ks = jax.random.split(key, 8)

    def linear(kw, kb, out_dim, in_dim):
        bound = 1.0 / math.sqrt(in_dim)
        w = jax.random.uniform(kw, (out_dim, in_dim), jnp.float32, -bound, bound)
        b = jax.random.uniform(kb, (out_dim,), jnp.float32, -bound, bound)
        return w, b

    wg, bg = linear(ks[0], ks[1], R, C)          # global_reduce
    wl, bl = linear(ks[2], ks[3], R, C)          # local_reduce
    wc, bc = linear(ks[4], ks[5], C, R)          # channel_select
    ws, bs = linear(ks[6], ks[7], 1, 2 * R)      # spatial_select
    return dict(
        norm_w=jnp.ones((C,), jnp.float32),
        norm_b=jnp.zeros((C,), jnp.float32),
        wg=wg, bg=bg, wl=wl, bl=bl, wc=wc, bc=bc, ws=ws, bs=bs,
    )


if __name__ == "__main__":
    B, N, C = 2, 16, 128
    R = int(C * 0.125)                           # reduce_channels = 16

    key = jax.random.PRNGKey(0)
    kx, kp = jax.random.split(key)
    x = jax.random.normal(kx, (B, N, C), jnp.float32)
    params = init_params(kp, C, R)

    ref = jax.block_until_ready(super_biattn_reference(x, params))

    # Fused single-call path (auto-selected at these shapes)
    out_fused = jax.block_until_ready(super_biattn_forward(x, params))
    # bf16 MXU operands + tanh-GELU vs exact-erf reference => loosened tolerance
    np.testing.assert_allclose(np.asarray(out_fused), np.asarray(ref),
                               rtol=2e-2, atol=1e-2)

    # Token-tiled two-pass fallback (forced, 2 token tiles) — exercises the
    # accumulator / apply path that large N*C would take on v7x.
    out_tiled = jax.block_until_ready(
        super_biattn_forward(x, params, force_token_tiled=True, token_tile=8))
    np.testing.assert_allclose(np.asarray(out_tiled), np.asarray(ref),
                               rtol=2e-2, atol=1e-2)

    print("KERNEL_OK")
</pallas_src>

<mosaic_0001>
module attributes {stable_mosaic.version = 11 : i64} {
  func.func @_biattn_fused_kernel(%arg0: i32, %arg1: memref<2x16x128xf32, #tpu.memory_space<vmem>>, %arg2: memref<3x128xf32, #tpu.memory_space<vmem>>, %arg3: memref<5x128xf32, #tpu.memory_space<vmem>>, %arg4: memref<128x256xbf16, #tpu.memory_space<vmem>>, %arg5: memref<128x128xbf16, #tpu.memory_space<vmem>>, %arg6: memref<2x16x128xf32, #tpu.memory_space<vmem>>) attributes {dimension_semantics = [#tpu.dimension_semantics<parallel>], iteration_bounds = array<i64: 1>, scalar_prefetch = 0 : i64, scratch_operands = 0 : i64, tpu.core_type = #tpu.core_type<tc>, window_params = [{transform_indices = @transform_0, window_bounds = array<i64: 2, 16, 128>}, {pipeline_mode = #tpu.pipeline_mode<synchronous>, transform_indices = @transform_1, window_bounds = array<i64: 3, 128>}, {pipeline_mode = #tpu.pipeline_mode<synchronous>, transform_indices = @transform_2, window_bounds = array<i64: 5, 128>}, {pipeline_mode = #tpu.pipeline_mode<synchronous>, transform_indices = @transform_3, window_bounds = array<i64: 128, 256>}, {pipeline_mode = #tpu.pipeline_mode<synchronous>, transform_indices = @transform_4, window_bounds = array<i64: 128, 128>}, {transform_indices = @transform_5, window_bounds = array<i64: 2, 16, 128>}]} {
    %c0 = arith.constant 0 : index
    %c0_0 = arith.constant 0 : index
    %c0_1 = arith.constant 0 : index
    %0 = vector.load %arg1[%c0, %c0_0, %c0_1] : memref<2x16x128xf32, #tpu.memory_space<vmem>>, vector<2x16x128xf32>
    %1 = vector.shape_cast %0 : vector<2x16x128xf32> to vector<32x128xf32>
    %c0_2 = arith.constant 0 : index
    %c0_3 = arith.constant 0 : index
    %2 = vector.load %arg2[%c0_2, %c0_3] : memref<3x128xf32, #tpu.memory_space<vmem>>, vector<1x128xf32>
    %c1 = arith.constant 1 : index
    %c0_4 = arith.constant 0 : index
    %3 = vector.load %arg2[%c1, %c0_4] : memref<3x128xf32, #tpu.memory_space<vmem>>, vector<1x128xf32>
    %c2 = arith.constant 2 : index
    %c0_5 = arith.constant 0 : index
    %4 = vector.load %arg2[%c2, %c0_5] : memref<3x128xf32, #tpu.memory_space<vmem>>, vector<1x128xf32>
    %c0_6 = arith.constant 0 : index
    %c0_7 = arith.constant 0 : index
    %5 = vector.load %arg3[%c0_6, %c0_7] : memref<5x128xf32, #tpu.memory_space<vmem>>, vector<1x128xf32>
    %c1_8 = arith.constant 1 : index
    %c0_9 = arith.constant 0 : index
    %6 = vector.load %arg3[%c1_8, %c0_9] : memref<5x128xf32, #tpu.memory_space<vmem>>, vector<1x128xf32>
    %c2_10 = arith.constant 2 : index
    %c0_11 = arith.constant 0 : index
    %7 = vector.load %arg3[%c2_10, %c0_11] : memref<5x128xf32, #tpu.memory_space<vmem>>, vector<1x128xf32>
    %c3 = arith.constant 3 : index
    %c0_12 = arith.constant 0 : index
    %8 = vector.load %arg3[%c3, %c0_12] : memref<5x128xf32, #tpu.memory_space<vmem>>, vector<1x128xf32>
    %c4 = arith.constant 4 : index
    %c0_13 = arith.constant 0 : index
    %9 = vector.load %arg3[%c4, %c0_13] : memref<5x128xf32, #tpu.memory_space<vmem>>, vector<1x128xf32>
    %cst = arith.constant dense<0.000000e+00> : vector<32xf32>
    %10 = vector.multi_reduction <add>, %1, %cst [1] : vector<32x128xf32> to vector<32xf32>
    %11 = vector.shape_cast %10 : vector<32xf32> to vector<32x1xf32>
    %cst_14 = arith.constant 1.280000e+02 : f32
    %12 = vector.broadcast %cst_14 : f32 to vector<32x1xf32>
    %13 = arith.divf %11, %12 : vector<32x1xf32>
    %14 = vector.broadcast %13 : vector<32x1xf32> to vector<32x128xf32>
    %15 = arith.subf %1, %14 : vector<32x128xf32>
    %16 = arith.mulf %15, %15 : vector<32x128xf32>
    %cst_15 = arith.constant dense<0.000000e+00> : vector<32xf32>
    %17 = vector.multi_reduction <add>, %16, %cst_15 [1] : vector<32x128xf32> to vector<32xf32>
    %18 = vector.shape_cast %17 : vector<32xf32> to vector<32x1xf32>
    %cst_16 = arith.constant 1.280000e+02 : f32
    %19 = vector.broadcast %cst_16 : f32 to vector<32x1xf32>
    %20 = arith.divf %18, %19 : vector<32x1xf32>
    %cst_17 = arith.constant 9.99999974E-6 : f32
    %21 = vector.broadcast %cst_17 : f32 to vector<32x1xf32>
    %22 = arith.addf %20, %21 : vector<32x1xf32>
    %23 = math.rsqrt %22 : vector<32x1xf32>
    %24 = vector.broadcast %23 : vector<32x1xf32> to vector<32x128xf32>
    %25 = arith.mulf %15, %24 : vector<32x128xf32>
    %26 = vector.broadcast %2 : vector<1x128xf32> to vector<32x128xf32>
    %27 = arith.mulf %25, %26 : vector<32x128xf32>
    %28 = vector.broadcast %3 : vector<1x128xf32> to vector<32x128xf32>
    %29 = arith.addf %27, %28 : vector<32x128xf32>
    %30 = arith.truncf %29 : vector<32x128xf32> to vector<32x128xbf16>
    %c0_18 = arith.constant 0 : index
    %c0_19 = arith.constant 0 : index
    %31 = vector.load %arg4[%c0_18, %c0_19] : memref<128x256xbf16, #tpu.memory_space<vmem>>, vector<128x256xbf16>
    %cst_20 = arith.constant dense<0.000000e+00> : vector<32x256xf32>
    %32 = tpu.matmul %30, %31, %cst_20 {dimension_numbers = #tpu.dot_dimension_numbers<[1], [0], [0], [1], [0, 0, 1, 1], [], []>} : vector<32x128xbf16>, vector<128x256xbf16>, vector<32x256xf32> -> vector<32x256xf32>
    %33 = vector.extract_strided_slice %32 {offsets = [0, 0], sizes = [32, 128], strides = [1, 1]} : vector<32x256xf32> to vector<32x128xf32>
    %34 = vector.broadcast %5 : vector<1x128xf32> to vector<32x128xf32>
    %35 = arith.addf %33, %34 : vector<32x128xf32>
    %cst_21 = arith.constant 5.000000e-01 : f32
    %36 = vector.broadcast %cst_21 : f32 to vector<32x128xf32>
    %37 = arith.mulf %36, %35 : vector<32x128xf32>
    %38 = arith.mulf %35, %35 : vector<32x128xf32>
    %39 = arith.mulf %38, %35 : vector<32x128xf32>
    %cst_22 = arith.constant 4.471500e-02 : f32
    %40 = vector.broadcast %cst_22 : f32 to vector<32x128xf32>
    %41 = arith.mulf %40, %39 : vector<32x128xf32>
    %42 = arith.addf %35, %41 : vector<32x128xf32>
    %cst_23 = arith.constant 0.797884583 : f32
    %43 = vector.broadcast %cst_23 : f32 to vector<32x128xf32>
    %44 = arith.mulf %43, %42 : vector<32x128xf32>
    %45 = math.tanh %44 : vector<32x128xf32>
    %cst_24 = arith.constant 1.000000e+00 : f32
    %46 = vector.broadcast %cst_24 : f32 to vector<32x128xf32>
    %47 = arith.addf %46, %45 : vector<32x128xf32>
    %48 = arith.mulf %37, %47 : vector<32x128xf32>
    %49 = vector.extract_strided_slice %32 {offsets = [0, 128], sizes = [32, 128], strides = [1, 1]} : vector<32x256xf32> to vector<32x128xf32>
    %50 = vector.shape_cast %49 : vector<32x128xf32> to vector<2x16x128xf32>
    %cst_25 = arith.constant dense<0.000000e+00> : vector<2x128xf32>
    %51 = vector.multi_reduction <add>, %50, %cst_25 [1] : vector<2x16x128xf32> to vector<2x128xf32>
    %cst_26 = arith.constant 6.250000e-02 : f32
    %52 = vector.broadcast %cst_26 : f32 to vector<2x128xf32>
    %53 = arith.mulf %51, %52 : vector<2x128xf32>
    %54 = vector.broadcast %6 : vector<1x128xf32> to vector<2x128xf32>
    %55 = arith.addf %53, %54 : vector<2x128xf32>
    %cst_27 = arith.constant 5.000000e-01 : f32
    %56 = vector.broadcast %cst_27 : f32 to vector<2x128xf32>
    %57 = arith.mulf %56, %55 : vector<2x128xf32>
    %58 = arith.mulf %55, %55 : vector<2x128xf32>
    %59 = arith.mulf %58, %55 : vector<2x128xf32>
    %cst_28 = arith.constant 4.471500e-02 : f32
    %60 = vector.broadcast %cst_28 : f32 to vector<2x128xf32>
    %61 = arith.mulf %60, %59 : vector<2x128xf32>
    %62 = arith.addf %55, %61 : vector<2x128xf32>
    %cst_29 = arith.constant 0.797884583 : f32
    %63 = vector.broadcast %cst_29 : f32 to vector<2x128xf32>
    %64 = arith.mulf %63, %62 : vector<2x128xf32>
    %65 = math.tanh %64 : vector<2x128xf32>
    %cst_30 = arith.constant 1.000000e+00 : f32
    %66 = vector.broadcast %cst_30 : f32 to vector<2x128xf32>
    %67 = arith.addf %66, %65 : vector<2x128xf32>
    %68 = arith.mulf %57, %67 : vector<2x128xf32>
    %69 = arith.truncf %68 : vector<2x128xf32> to vector<2x128xbf16>
    %c0_31 = arith.constant 0 : index
    %c0_32 = arith.constant 0 : index
    %70 = vector.load %arg5[%c0_31, %c0_32] : memref<128x128xbf16, #tpu.memory_space<vmem>>, vector<128x128xbf16>
    %cst_33 = arith.constant dense<0.000000e+00> : vector<2x128xf32>
    %71 = tpu.matmul %69, %70, %cst_33 {dimension_numbers = #tpu.dot_dimension_numbers<[1], [0], [0], [1], [0, 0, 1, 1], [], []>} : vector<2x128xbf16>, vector<128x128xbf16>, vector<2x128xf32> -> vector<2x128xf32>
    %72 = vector.broadcast %4 : vector<1x128xf32> to vector<2x128xf32>
    %73 = arith.addf %71, %72 : vector<2x128xf32>
    %74 = arith.negf %73 : vector<2x128xf32>
    %75 = math.exp %74 : vector<2x128xf32>
    %cst_34 = arith.constant 1.000000e+00 : f32
    %76 = vector.broadcast %cst_34 : f32 to vector<2x128xf32>
    %77 = arith.addf %76, %75 : vector<2x128xf32>
    %78 = arith.divf %76, %77 : vector<2x128xf32>
    %79 = vector.broadcast %7 : vector<1x128xf32> to vector<32x128xf32>
    %80 = arith.mulf %48, %79 : vector<32x128xf32>
    %cst_35 = arith.constant dense<0.000000e+00> : vector<32xf32>
    %81 = vector.multi_reduction <add>, %80, %cst_35 [1] : vector<32x128xf32> to vector<32xf32>
    %82 = vector.shape_cast %81 : vector<32xf32> to vector<32x1xf32>
    %83 = vector.broadcast %8 : vector<1x128xf32> to vector<2x128xf32>
    %84 = arith.mulf %68, %83 : vector<2x128xf32>
    %85 = vector.broadcast %9 : vector<1x128xf32> to vector<2x128xf32>
    %86 = arith.addf %84, %85 : vector<2x128xf32>
    %cst_36 = arith.constant dense<0.000000e+00> : vector<2xf32>
    %87 = vector.multi_reduction <add>, %86, %cst_36 [1] : vector<2x128xf32> to vector<2xf32>
    %88 = vector.shape_cast %87 : vector<2xf32> to vector<2x1xf32>
    %89 = vector.shape_cast %82 : vector<32x1xf32> to vector<2x16x1xf32>
    %90 = vector.shape_cast %88 : vector<2x1xf32> to vector<2x1x1xf32>
    %91 = vector.broadcast %90 : vector<2x1x1xf32> to vector<2x16x1xf32>
    %92 = arith.addf %89, %91 : vector<2x16x1xf32>
    %93 = arith.negf %92 : vector<2x16x1xf32>
    %94 = math.exp %93 : vector<2x16x1xf32>
    %cst_37 = arith.constant 1.000000e+00 : f32
    %95 = vector.broadcast %cst_37 : f32 to vector<2x16x1xf32>
    %96 = arith.addf %95, %94 : vector<2x16x1xf32>
    %97 = arith.divf %95, %96 : vector<2x16x1xf32>
    %98 = vector.shape_cast %78 : vector<2x128xf32> to vector<2x1x128xf32>
    %99 = vector.broadcast %98 : vector<2x1x128xf32> to vector<2x16x128xf32>
    %100 = vector.broadcast %97 : vector<2x16x1xf32> to vector<2x16x128xf32>
    %101 = arith.mulf %99, %100 : vector<2x16x128xf32>
    %102 = arith.mulf %0, %101 : vector<2x16x128xf32>
    %c0_38 = arith.constant 0 : index
    %c0_39 = arith.constant 0 : index
    %c0_40 = arith.constant 0 : index
    %103 = vector.load %arg6[%c0_38, %c0_39, %c0_40] : memref<2x16x128xf32, #tpu.memory_space<vmem>>, vector<2x16x128xf32>
    tpu.vector_store %arg6[%c0_38, %c0_39, %c0_40], %102 {strides = array<i32>} : memref<2x16x128xf32, #tpu.memory_space<vmem>>, vector<2x16x128xf32>,
    return
  }
  func.func @transform_0(%arg0: i32) -> (i32, i32, i32) {
    %c0_i32 = arith.constant 0 : i32
    %c0_i32_0 = arith.constant 0 : i32
    %c0_i32_1 = arith.constant 0 : i32
    return %arg0, %c0_i32, %c0_i32_0 : i32, i32, i32
  }
  func.func @transform_1(%arg0: i32) -> (i32, i32) {
    %c0_i32 = arith.constant 0 : i32
    %c0_i32_0 = arith.constant 0 : i32
    %c0_i32_1 = arith.constant 0 : i32
    return %c0_i32, %c0_i32_0 : i32, i32
  }
  func.func @transform_2(%arg0: i32) -> (i32, i32) {
    %c0_i32 = arith.constant 0 : i32
    %c0_i32_0 = arith.constant 0 : i32
    %c0_i32_1 = arith.constant 0 : i32
    return %c0_i32, %c0_i32_0 : i32, i32
  }
  func.func @transform_3(%arg0: i32) -> (i32, i32) {
    %c0_i32 = arith.constant 0 : i32
    %c0_i32_0 = arith.constant 0 : i32
    %c0_i32_1 = arith.constant 0 : i32
    return %c0_i32, %c0_i32_0 : i32, i32
  }
  func.func @transform_4(%arg0: i32) -> (i32, i32) {
    %c0_i32 = arith.constant 0 : i32
    %c0_i32_0 = arith.constant 0 : i32
    %c0_i32_1 = arith.constant 0 : i32
    return %c0_i32, %c0_i32_0 : i32, i32
  }
  func.func @transform_5(%arg0: i32) -> (i32, i32, i32) {
    %c0_i32 = arith.constant 0 : i32
    %c0_i32_0 = arith.constant 0 : i32
    %c0_i32_1 = arith.constant 0 : i32
    return %arg0, %c0_i32, %c0_i32_0 : i32, i32, i32
  }
}

</mosaic_0001>

<llo_original>
// kernel: tpu_custom_call.1
$region0: #{tpu_custom_call.1}
  #allocation0 [shape = 'u32[]', space=smem, size = 0x4, offset = 0x4, fixed_abs, tag = 'smem constant byte address 0x4 - core index']
  #allocation1 [shape = 'u32[144,128]{1,0:T(1,128)}', space=vmem, size = 0x12000, scoped, tag = 'internal scratch']
  %s0 = inlined_call_operand.hbm [shape: f32[2,16,128], index: 0, kind: input, shape index: {}]
  %s1 = inlined_call_operand.hbm [shape: f32[3,128], index: 1, kind: input, shape index: {}]
  %s2 = inlined_call_operand.hbm [shape: f32[5,128], index: 2, kind: input, shape index: {}]
  %s3 = inlined_call_operand.hbm [shape: bf16[128,256], index: 3, kind: input, shape index: {}]
  %s4 = inlined_call_operand.hbm [shape: bf16[128,128], index: 4, kind: input, shape index: {}]
  %s5 = inlined_call_operand.hbm [shape: f32[2,16,128], index: 5, kind: output, shape index: {}]
  %s6 = sld [smem:[#allocation0]]
  $region50: #{tpu_custom_call.1} parent=0
    _
  %s8 = ssub.s32 1, %s6
  %s9 = scalar_select 0, %s8, %s6
  $region1: #{tpu_custom_call.1} parent=0
    #allocation2 [shape = 'u8[16384]{0}', space=vmem, size = 0x4000, scoped, tag = 'input window, operand 0, single buffered']
    #allocation3 [shape = 's32[1]{0}', space=sflag, size = 0x4, scoped, tag = 'scoped memory for tpu_custom_call.1']
    #allocation4 [shape = 's32[1]{0}', space=sflag, size = 0x4, scoped, tag = 'scoped memory for tpu_custom_call.1']
    #allocation5 [shape = 'u8[2048]{0}', space=vmem, size = 0x800, scoped, tag = 'input window, operand 1, single buffered']
    #allocation6 [shape = 's32[1]{0}', space=sflag, size = 0x4, scoped, tag = 'scoped memory for tpu_custom_call.1']
    #allocation7 [shape = 'u8[4096]{0}', space=vmem, size = 0x1000, scoped, tag = 'input window, operand 2, single buffered']
    #allocation8 [shape = 'u8[65536]{0}', space=vmem, size = 0x10000, scoped, tag = 'input window, operand 3, single buffered']
    #allocation9 [shape = 's32[1]{0}', space=sflag, size = 0x4, scoped, tag = 'scoped memory for tpu_custom_call.1']
    #allocation10 [shape = 'u8[32768]{0}', space=vmem, size = 0x8000, scoped, tag = 'input window, operand 4, single buffered']
    #allocation11 [shape = 'u8[16384]{0}', space=vmem, size = 0x4000, scoped, tag = 'output window, operand 0, single buffered']
    %10 = vsyncpa [#allocation3], 0
    %11 = vsyncpa [#allocation6], 0
    %12 = vsyncpa [#allocation9], 0
    %13 = vsyncpa [#allocation4], 0
    // Predicated region
    $region2: #{tpu_custom_call.1} parent=1 // pred_check
      _
    $region3: #{tpu_custom_call.1} parent=1 // pred_check_branch
      %15 = sbr.rel (0) target = $region5
    $region4: #{tpu_custom_call.1} parent=1 // pred_region
      %s17 = ssub.s32 512, 512
      %18 = vsyncadd [#allocation3], %s17
      %s19 = sshll.u32 [#allocation2], 4
      %s20 = int_to_ptr.vmem [resolvable:$true] %s19
      %25 = dma.hbm_to_vmem [thread:$0]  %s0, 512, %s20, [#allocation3], 128, 128, 8
    $region5: #{tpu_custom_call.1} parent=1 // pred_fallthru
      _
    // Predicated region
    $region6: #{tpu_custom_call.1} parent=1 // pred_check
      _
    $region7: #{tpu_custom_call.1} parent=1 // pred_check_branch
      %27 = sbr.rel (0) target = $region9
    $region8: #{tpu_custom_call.1} parent=1 // pred_region
      %s29 = ssub.s32 64, 64
      %30 = vsyncadd [#allocation6], %s29
      %s32 = sshll.u32 [#allocation5], 4
      %s33 = int_to_ptr.vmem [resolvable:$true] %s32
      %35 = dma.hbm_to_vmem [thread:$0]  %s1, 64, %s33, [#allocation6]
    $region9: #{tpu_custom_call.1} parent=1 // pred_fallthru
      _
    // Predicated region
    $region10: #{tpu_custom_call.1} parent=1 // pred_check
      _
    $region11: #{tpu_custom_call.1} parent=1 // pred_check_branch
      %37 = sbr.rel (0) target = $region13
    $region12: #{tpu_custom_call.1} parent=1 // pred_region
      %s39 = ssub.s32 128, 128
      %40 = vsyncadd [#allocation6], %s39
      %s42 = sshll.u32 [#allocation7], 4
      %s43 = int_to_ptr.vmem [resolvable:$true] %s42
      %45 = dma.hbm_to_vmem [thread:$0]  %s2, 128, %s43, [#allocation6]
    $region13: #{tpu_custom_call.1} parent=1 // pred_fallthru
      _
    // Predicated region
    $region14: #{tpu_custom_call.1} parent=1 // pred_check
      _
    $region15: #{tpu_custom_call.1} parent=1 // pred_check_branch
      %47 = sbr.rel (0) target = $region17
    $region16: #{tpu_custom_call.1} parent=1 // pred_region
      %s49 = ssub.s32 2048, 2048
      %50 = vsyncadd [#allocation9], %s49
      %s51 = sshll.u32 [#allocation8], 4
      %s52 = int_to_ptr.vmem [resolvable:$true] %s51
      %57 = dma.hbm_to_vmem [thread:$0]  %s3, 2048, %s52, [#allocation9], 128, 128, 8
    $region17: #{tpu_custom_call.1} parent=1 // pred_fallthru
      _
    // Predicated region
    $region18: #{tpu_custom_call.1} parent=1 // pred_check
      _
    $region19: #{tpu_custom_call.1} parent=1 // pred_check_branch
      %59 = sbr.rel (0) target = $region21
    $region20: #{tpu_custom_call.1} parent=1 // pred_region
      %s61 = ssub.s32 1024, 1024
      %62 = vsyncadd [#allocation9], %s61
      %s63 = sshll.u32 [#allocation10], 4
      %s64 = int_to_ptr.vmem [resolvable:$true] %s63
      %69 = dma.hbm_to_vmem [thread:$0]  %s4, 1024, %s64, [#allocation9], 64, 64, 4
    $region21: #{tpu_custom_call.1} parent=1 // pred_fallthru
      _
    // Predicated region
    $region22: #{tpu_custom_call.1} parent=1 // pred_check
      _
    $region23: #{tpu_custom_call.1} parent=1 // pred_check_branch
      %71 = sbr.rel (0) target = $region25
    $region24: #{tpu_custom_call.1} parent=1 // pred_region
      %72 = dma.done [#allocation3], 512
    $region25: #{tpu_custom_call.1} parent=1 // pred_fallthru
      _
    // Predicated region
    $region26: #{tpu_custom_call.1} parent=1 // pred_check
      _
    $region27: #{tpu_custom_call.1} parent=1 // pred_check_branch
      %74 = sbr.rel (0) target = $region29
    $region28: #{tpu_custom_call.1} parent=1 // pred_region
      %75 = dma.done [#allocation6], 64
    $region29: #{tpu_custom_call.1} parent=1 // pred_fallthru
      _
    // Predicated region
    $region30: #{tpu_custom_call.1} parent=1 // pred_check
      _
    $region31: #{tpu_custom_call.1} parent=1 // pred_check_branch
      %77 = sbr.rel (0) target = $region33
    $region32: #{tpu_custom_call.1} parent=1 // pred_region
      %78 = dma.done [#allocation6], 128
    $region33: #{tpu_custom_call.1} parent=1 // pred_fallthru
      _
    // Predicated region
    $region34: #{tpu_custom_call.1} parent=1 // pred_check
      _
    $region35: #{tpu_custom_call.1} parent=1 // pred_check_branch
      %80 = sbr.rel (0) target = $region37
    $region36: #{tpu_custom_call.1} parent=1 // pred_region
      %81 = dma.done [#allocation9], 2048
    $region37: #{tpu_custom_call.1} parent=1 // pred_fallthru
      _
    // Predicated region
    $region38: #{tpu_custom_call.1} parent=1 // pred_check
      _
    $region39: #{tpu_custom_call.1} parent=1 // pred_check_branch
      %83 = sbr.rel (0) target = $region41
    $region40: #{tpu_custom_call.1} parent=1 // pred_region
      %84 = dma.done [#allocation9], 1024
    $region41: #{tpu_custom_call.1} parent=1 // pred_fallthru
      _
    %v86 = vld [vmem:[#allocation2] sm:$0xff]
    %v87 = vld [vmem:[#allocation2 + $0x8] sm:$0xff]
    %v88 = vld [vmem:[#allocation2 + $0x10] sm:$0xff]
    %v89 = vld [vmem:[#allocation2 + $0x18] sm:$0xff]
    %v90 = vld [vmem:[#allocation5] sm:$0x1]
    %v91 = vld [vmem:[#allocation5 + $0x1] sm:$0x1]
    %v92 = vld [vmem:[#allocation5 + $0x2] sm:$0x1]
    %v93 = vld [vmem:[#allocation7] sm:$0x1]
    %v94 = vld [vmem:[#allocation7 + $0x1] sm:$0x1]
    %v95 = vld [vmem:[#allocation7 + $0x2] sm:$0x1]
    %v96 = vld [vmem:[#allocation7 + $0x3] sm:$0x1]
    %v97 = vld [vmem:[#allocation7 + $0x4] sm:$0x1]
    %98 = vadd.xlane.f32.xlu0 %v86
    %v99 = vpop.xlane.xlu0 %98
    %100 = vadd.xlane.f32.xlu0 %v87
    %v101 = vpop.xlane.xlu0 %100
    %102 = vadd.xlane.f32.xlu0 %v88
    %v103 = vpop.xlane.xlu0 %102
    %104 = vadd.xlane.f32.xlu0 %v89
    %v105 = vpop.xlane.xlu0 %104
    %v106 = vrcp.pop 128.0
    %v107 = vmul.f32 %v99, %v106
    %v108 = vmul.f32 %v101, %v106
    %v109 = vmul.f32 %v103, %v106
    %v110 = vmul.f32 %v105, %v106
    %v111 = vsub.f32 %v86, %v107
    %v112 = vsub.f32 %v87, %v108
    %v113 = vsub.f32 %v88, %v109
    %v114 = vsub.f32 %v89, %v110
    %v115 = vmul.f32 %v111, %v111
    %v116 = vmul.f32 %v112, %v112
    %v117 = vmul.f32 %v113, %v113
    %v118 = vmul.f32 %v114, %v114
    %119 = vadd.xlane.f32.xlu0 %v115
    %v120 = vpop.xlane.xlu0 %119
    %121 = vadd.xlane.f32.xlu0 %v116
    %v122 = vpop.xlane.xlu0 %121
    %123 = vadd.xlane.f32.xlu0 %v117
    %v124 = vpop.xlane.xlu0 %123
    %125 = vadd.xlane.f32.xlu0 %v118
    %v126 = vpop.xlane.xlu0 %125
    %v127 = vmul.f32 %v120, %v106
    %v128 = vmul.f32 %v122, %v106
    %v129 = vmul.f32 %v124, %v106
    %v130 = vmul.f32 %v126, %v106
    %v131 = vadd.f32 %v127, 1e-05
    %v132 = vadd.f32 %v128, 1e-05
    %v133 = vadd.f32 %v129, 1e-05
    %v134 = vadd.f32 %v130, 1e-05
    %v135 = vrsqrt.pop %v131
    %v136 = vrsqrt.pop %v132
    %v137 = vrsqrt.pop %v133
    %v138 = vrsqrt.pop %v134
    %v139 = vmul.f32 %v111, %v135
    %v140 = vmul.f32 %v112, %v136
    %v141 = vmul.f32 %v113, %v137
    %v142 = vmul.f32 %v114, %v138
    %v143 = vlaneseq
    %v144 = vshrl.u32 %v143, 7
    %v145 = vsub.s32 0, %v144
    %v146 = vrot.slane %v90, %v145
    %v147 = vmul.f32 %v139, %v146
    %v148 = vmul.f32 %v140, %v146
    %v149 = vmul.f32 %v141, %v146
    %v150 = vmul.f32 %v142, %v146
    %v151 = vlaneseq
    %v152 = vshrl.u32 %v151, 7
    %v153 = vsub.s32 0, %v152
    %v154 = vrot.slane %v91, %v153
    %v155 = vadd.f32 %v147, %v154
    %v156 = vadd.f32 %v148, %v154
    %v157 = vadd.f32 %v149, %v154
    %v158 = vadd.f32 %v150, %v154
    %v159 = vpack.c.bf16 %v156, %v155
    %v160 = vpack.c.bf16 %v158, %v157
    %v161 = vld [vmem:[#allocation8] sm:$0xff]
    %v162 = vld [vmem:[#allocation8 + $0x8] sm:$0xff]
    %v163 = vld [vmem:[#allocation8 + $0x10] sm:$0xff]
    %v164 = vld [vmem:[#allocation8 + $0x18] sm:$0xff]
    %v165 = vld [vmem:[#allocation8 + $0x20] sm:$0xff]
    %v166 = vld [vmem:[#allocation8 + $0x28] sm:$0xff]
    %v167 = vld [vmem:[#allocation8 + $0x30] sm:$0xff]
    %v168 = vld [vmem:[#allocation8 + $0x38] sm:$0xff]
    %v169 = vld [vmem:[#allocation8 + $0x40] sm:$0xff]
    %v170 = vld [vmem:[#allocation8 + $0x48] sm:$0xff]
    %v171 = vld [vmem:[#allocation8 + $0x50] sm:$0xff]
    %v172 = vld [vmem:[#allocation8 + $0x58] sm:$0xff]
    %v173 = vld [vmem:[#allocation8 + $0x60] sm:$0xff]
    %v174 = vld [vmem:[#allocation8 + $0x68] sm:$0xff]
    %v175 = vld [vmem:[#allocation8 + $0x70] sm:$0xff]
    %v176 = vld [vmem:[#allocation8 + $0x78] sm:$0xff]
    %v193 = vunpack.c.l.b16 %v161
    %v194 = vunpack.c.h.b16 %v161
    %v195 = vunpack.c.l.b16 %v162
    %v196 = vunpack.c.h.b16 %v162
    %v197 = vunpack.c.l.b16 %v163
    %v198 = vunpack.c.h.b16 %v163
    %v199 = vunpack.c.l.b16 %v164
    %v200 = vunpack.c.h.b16 %v164
    %v201 = vunpack.c.l.b16 %v165
    %v202 = vunpack.c.h.b16 %v165
    %v203 = vunpack.c.l.b16 %v166
    %v204 = vunpack.c.h.b16 %v166
    %v205 = vunpack.c.l.b16 %v167
    %v206 = vunpack.c.h.b16 %v167
    %v207 = vunpack.c.l.b16 %v168
    %v208 = vunpack.c.h.b16 %v168
    %v209 = vunpack.c.l.b16 %v169
    %v210 = vunpack.c.h.b16 %v169
    %v211 = vunpack.c.l.b16 %v170
    %v212 = vunpack.c.h.b16 %v170
    %v213 = vunpack.c.l.b16 %v171
    %v214 = vunpack.c.h.b16 %v171
    %v215 = vunpack.c.l.b16 %v172
    %v216 = vunpack.c.h.b16 %v172
    %v217 = vunpack.c.l.b16 %v173
    %v218 = vunpack.c.h.b16 %v173
    %v219 = vunpack.c.l.b16 %v174
    %v220 = vunpack.c.h.b16 %v174
    %v221 = vunpack.c.l.b16 %v175
    %v222 = vunpack.c.h.b16 %v175
    %v223 = vunpack.c.l.b16 %v176
    %v224 = vunpack.c.h.b16 %v176
    %v225 = vpack.c.b16 %v195, %v193
    %v226 = vpack.c.b16 %v196, %v194
    %v227 = vpack.c.b16 %v199, %v197
    %v228 = vpack.c.b16 %v200, %v198
    %v229 = vpack.c.b16 %v203, %v201
    %v230 = vpack.c.b16 %v204, %v202
    %v231 = vpack.c.b16 %v207, %v205
    %v232 = vpack.c.b16 %v208, %v206
    %v233 = vpack.c.b16 %v211, %v209
    %v234 = vpack.c.b16 %v212, %v210
    %v235 = vpack.c.b16 %v215, %v213
    %v236 = vpack.c.b16 %v216, %v214
    %v237 = vpack.c.b16 %v219, %v217
    %v238 = vpack.c.b16 %v220, %v218
    %v239 = vpack.c.b16 %v223, %v221
    %v240 = vpack.c.b16 %v224, %v222
    %257 = vmatprep.subr.bf16.mxu0 %v226
    %258 = vmatpush1.bf16.msra.mxu0 %v225
    %259 = vmatprep.subr.bf16.mxu0 %v228
    %260 = vmatpush1.bf16.msra.mxu0 %v227
    %261 = vmatprep.subr.bf16.mxu0 %v230
    %262 = vmatpush1.bf16.msra.mxu0 %v229
    %263 = vmatprep.subr.bf16.mxu0 %v232
    %264 = vmatpush1.bf16.msra.mxu0 %v231
    %265 = vmatprep.subr.bf16.mxu0 %v234
    %266 = vmatpush1.bf16.msra.mxu0 %v233
    %267 = vmatprep.subr.bf16.mxu0 %v236
    %268 = vmatpush1.bf16.msra.mxu0 %v235
    %269 = vmatprep.subr.bf16.mxu0 %v238
    %270 = vmatpush1.bf16.msra.mxu0 %v237
    %271 = vmatprep.subr.bf16.mxu0 %v240
    %272 = vmatpush1.bf16.msra.mxu0 %v239
    %273 = vmatprep.subr.bf16.mxu0 0
    %274 = vmatpush1.bf16.msra.mxu0 0
    %275 = vmatprep.subr.bf16.mxu0 0
    %276 = vmatpush1.bf16.msra.mxu0 0
    %277 = vmatprep.subr.bf16.mxu0 0
    %278 = vmatpush1.bf16.msra.mxu0 0
    %279 = vmatprep.subr.bf16.mxu0 0
    %280 = vmatpush1.bf16.msra.mxu0 0
    %281 = vmatprep.subr.bf16.mxu0 0
    %282 = vmatpush1.bf16.msra.mxu0 0
    %283 = vmatprep.subr.bf16.mxu0 0
    %284 = vmatpush1.bf16.msra.mxu0 0
    %285 = vmatprep.subr.bf16.mxu0 0
    %286 = vmatpush1.bf16.msra.mxu0 0
    %287 = vmatprep.subr.bf16.mxu0 0
    %288 = vmatpush1.bf16.msra.mxu0 0
    %289 = vmatprep.mubr.bf16.mxu0 0
    %290 = vmatmul.mubr.bf16.gmra.mrb[0].mxu0 %v159
    %v291 = vpop.f32.mrb[0].mxu0
    %v292 = vadd.f32 0.0, %v291
    %v293 = vpop.f32.mrb[0].mxu0
    %v294 = vadd.f32 0.0, %v293
    %v295 = vpop.f32.mrb[0].mxu0
    %v296 = vadd.f32 0.0, %v295
    %v297 = vpop.f32.mrb[0].mxu0
    %v298 = vadd.f32 0.0, %v297
    %299 = vmatprep.mubr.bf16.mxu0 0
    %300 = vmatmul.mubr.bf16.gmra.mrb[0].mxu0 %v160
    %v301 = vpop.f32.mrb[0].mxu0
    %v302 = vadd.f32 0.0, %v301
    %v303 = vpop.f32.mrb[0].mxu0
    %v304 = vadd.f32 0.0, %v303
    %v305 = vpop.f32.mrb[0].mxu0
    %v306 = vadd.f32 0.0, %v305
    %v307 = vpop.f32.mrb[0].mxu0
    %v308 = vadd.f32 0.0, %v307
    %309 = vdwg.mxu0
    %v310 = vlaneseq
    %v311 = vshrl.u32 %v310, 7
    %v312 = vsub.s32 0, %v311
    %v313 = vrot.slane %v93, %v312
    %v314 = vadd.f32 %v292, %v313
    %v315 = vadd.f32 %v296, %v313
    %v316 = vadd.f32 %v302, %v313
    %v317 = vadd.f32 %v306, %v313
    %v318 = vmul.f32 %v314, 0.5
    %v319 = vmul.f32 %v315, 0.5
    %v320 = vmul.f32 %v316, 0.5
    %v321 = vmul.f32 %v317, 0.5
    %v322 = vmul.f32 %v314, %v314
    %v323 = vmul.f32 %v315, %v315
    %v324 = vmul.f32 %v316, %v316
    %v325 = vmul.f32 %v317, %v317
    %v326 = vmul.f32 %v322, %v314
    %v327 = vmul.f32 %v323, %v315
    %v328 = vmul.f32 %v324, %v316
    %v329 = vmul.f32 %v325, %v317
    %v330 = vmul.f32 %v326, 0.044715
    %v331 = vmul.f32 %v327, 0.044715
    %v332 = vmul.f32 %v328, 0.044715
    %v333 = vmul.f32 %v329, 0.044715
    %v334 = vadd.f32 %v314, %v330
    %v335 = vadd.f32 %v315, %v331
    %v336 = vadd.f32 %v316, %v332
    %v337 = vadd.f32 %v317, %v333
    %v338 = vmul.f32 %v334, 0.7978846
    %v339 = vmul.f32 %v335, 0.7978846
    %v340 = vmul.f32 %v336, 0.7978846
    %v341 = vmul.f32 %v337, 0.7978846
    %v342 = vtanh.pop %v338
    %v343 = vtanh.pop %v339
    %v344 = vtanh.pop %v340
    %v345 = vtanh.pop %v341
    %v346 = vadd.f32 %v342, 1.0
    %v347 = vadd.f32 %v343, 1.0
    %v348 = vadd.f32 %v344, 1.0
    %v349 = vadd.f32 %v345, 1.0
    %v350 = vmul.f32 %v318, %v346
    %v351 = vmul.f32 %v319, %v347
    %v352 = vmul.f32 %v320, %v348
    %v353 = vmul.f32 %v321, %v349
    %v354 = vadd.f32 %v294, %v298
    %v355 = vrot.slane %v354, 4
    %v356 = vadd.f32 %v354, %v355
    %v357 = vrot.slane %v356, 2
    %v358 = vadd.f32 %v356, %v357
    %v359 = vrot.slane %v358, 1
    %v360 = vadd.f32 %v358, %v359
    %v361 = vadd.f32 %v304, %v308
    %v362 = vrot.slane %v361, 4
    %v363 = vadd.f32 %v361, %v362
    %v364 = vrot.slane %v363, 2
    %v365 = vadd.f32 %v363, %v364
    %v366 = vrot.slane %v365, 1
    %v367 = vadd.f32 %v365, %v366
    %v368 = vmul.f32 %v360, 0.0625
    %v369 = vmul.f32 %v367, 0.0625
    %v370 = vlaneseq
    %v371 = vshrl.u32 %v370, 7
    %v372 = vsub.s32 0, %v371
    %v373 = vrot.slane %v94, %v372
    %v374 = vadd.f32 %v368, %v373
    %v375 = vadd.f32 %v369, %v373
    %v376 = vmul.f32 %v374, 0.5
    %v377 = vmul.f32 %v375, 0.5
    %v378 = vmul.f32 %v374, %v374
    %v379 = vmul.f32 %v375, %v375
    %v380 = vmul.f32 %v378, %v374
    %v381 = vmul.f32 %v379, %v375
    %v382 = vmul.f32 %v380, 0.044715
    %v383 = vmul.f32 %v381, 0.044715
    %v384 = vadd.f32 %v374, %v382
    %v385 = vadd.f32 %v375, %v383
    %v386 = vmul.f32 %v384, 0.7978846
    %v387 = vmul.f32 %v385, 0.7978846
    %v388 = vtanh.pop %v386
    %v389 = vtanh.pop %v387
    %v390 = vadd.f32 %v388, 1.0
    %v391 = vadd.f32 %v389, 1.0
    %v392 = vmul.f32 %v376, %v390
    %v393 = vmul.f32 %v377, %v391
    %v394 = vpack.c.bf16 %v392, %v392
    %v395 = vpack.c.bf16 %v393, %v393
    %v396 = vld [vmem:[#allocation10] sm:$0xf]
    %v397 = vld [vmem:[#allocation10 + $0x4] sm:$0xf]
    %v398 = vld [vmem:[#allocation10 + $0x8] sm:$0xf]
    %v399 = vld [vmem:[#allocation10 + $0xc] sm:$0xf]
    %v400 = vld [vmem:[#allocation10 + $0x10] sm:$0xf]
    %v401 = vld [vmem:[#allocation10 + $0x14] sm:$0xf]
    %v402 = vld [vmem:[#allocation10 + $0x18] sm:$0xf]
    %v403 = vld [vmem:[#allocation10 + $0x1c] sm:$0xf]
    %v404 = vld [vmem:[#allocation10 + $0x20] sm:$0xf]
    %v405 = vld [vmem:[#allocation10 + $0x24] sm:$0xf]
    %v406 = vld [vmem:[#allocation10 + $0x28] sm:$0xf]
    %v407 = vld [vmem:[#allocation10 + $0x2c] sm:$0xf]
    %v408 = vld [vmem:[#allocation10 + $0x30] sm:$0xf]
    %v409 = vld [vmem:[#allocation10 + $0x34] sm:$0xf]
    %v410 = vld [vmem:[#allocation10 + $0x38] sm:$0xf]
    %v411 = vld [vmem:[#allocation10 + $0x3c] sm:$0xf]
    %v412 = vlaneseq
    %v413 = vshrl.u32 %v412, 7
    %v414 = vsub.s32 0, %v413
    %v415 = vrot.slane %v92, %v414
    %v418 = vunpack.c.l.b16 %v394
    %v419 = vunpack.c.l.b16 %v395
    %v420 = vrot.slane %v419, 7
    %vm421 = vcmask 1041409
    %v422 = vsel %vm421, %v420, %v418
    %v423 = vpack.c.b16 %v422, %v422
    %v441 = vunpack.c.l.b16 %v396
    %v442 = vunpack.c.l.b16 %v397
    %v443 = vunpack.c.l.b16 %v398
    %v444 = vunpack.c.l.b16 %v399
    %v445 = vunpack.c.l.b16 %v400
    %v446 = vunpack.c.l.b16 %v401
    %v447 = vunpack.c.l.b16 %v402
    %v448 = vunpack.c.l.b16 %v403
    %v449 = vunpack.c.l.b16 %v404
    %v450 = vunpack.c.l.b16 %v405
    %v451 = vunpack.c.l.b16 %v406
    %v452 = vunpack.c.l.b16 %v407
    %v453 = vunpack.c.l.b16 %v408
    %v454 = vunpack.c.l.b16 %v409
    %v455 = vunpack.c.l.b16 %v410
    %v456 = vunpack.c.l.b16 %v411
    %v457 = vpack.c.b16 %v442, %v441
    %v458 = vpack.c.b16 %v444, %v443
    %v459 = vpack.c.b16 %v446, %v445
    %v460 = vpack.c.b16 %v448, %v447
    %v461 = vpack.c.b16 %v450, %v449
    %v462 = vpack.c.b16 %v452, %v451
    %v463 = vpack.c.b16 %v454, %v453
    %v464 = vpack.c.b16 %v456, %v455
    %473 = vmatprep.subr.bf16.mxu0 0
    %474 = vmatpush1.bf16.msra.mxu0 %v457
    %475 = vmatprep.subr.bf16.mxu0 0
    %476 = vmatpush1.bf16.msra.mxu0 %v458
    %477 = vmatprep.subr.bf16.mxu0 0
    %478 = vmatpush1.bf16.msra.mxu0 %v459
    %479 = vmatprep.subr.bf16.mxu0 0
    %480 = vmatpush1.bf16.msra.mxu0 %v460
    %481 = vmatprep.subr.bf16.mxu0 0
    %482 = vmatpush1.bf16.msra.mxu0 %v461
    %483 = vmatprep.subr.bf16.mxu0 0
    %484 = vmatpush1.bf16.msra.mxu0 %v462
    %485 = vmatprep.subr.bf16.mxu0 0
    %486 = vmatpush1.bf16.msra.mxu0 %v463
    %487 = vmatprep.subr.bf16.mxu0 0
    %488 = vmatpush1.bf16.msra.mxu0 %v464
    %489 = vmatprep.subr.bf16.mxu0 0
    %490 = vmatpush1.bf16.msra.mxu0 0
    %491 = vmatprep.subr.bf16.mxu0 0
    %492 = vmatpush1.bf16.msra.mxu0 0
    %493 = vmatprep.subr.bf16.mxu0 0
    %494 = vmatpush1.bf16.msra.mxu0 0
    %495 = vmatprep.subr.bf16.mxu0 0
    %496 = vmatpush1.bf16.msra.mxu0 0
    %497 = vmatprep.subr.bf16.mxu0 0
    %498 = vmatpush1.bf16.msra.mxu0 0
    %499 = vmatprep.subr.bf16.mxu0 0
    %500 = vmatpush1.bf16.msra.mxu0 0
    %501 = vmatprep.subr.bf16.mxu0 0
    %502 = vmatpush1.bf16.msra.mxu0 0
    %503 = vmatprep.subr.bf16.mxu0 0
    %504 = vmatpush1.bf16.msra.mxu0 0
    %505 = vmatprep.mubr.bf16.mxu0 0
    %506 = vmatmul.mubr.bf16.gmra.mrb[0].mxu0 %v423
    %v507 = vpop.f32.mrb[0].mxu0
    %v508 = vadd.f32 %v415, %v507
    %v509 = vpop.f32.mrb[0].mxu0
    %v510 = vpop.f32.mrb[0].mxu0
    %v511 = vpop.f32.mrb[0].mxu0
    %512 = vdwg.mxu0
    %v513 = vxor.u32 %v508, 2147483648
    %v514 = vmul.f32 %v513, 1.442695
    %v515 = vpow.pop %v514
    %v516 = vadd.f32 %v515, 1.0
    %v517 = vrcp.pop %v516
    %v518 = vmul.f32 1.0, %v517
    %v519 = vlaneseq
    %v520 = vshrl.u32 %v519, 7
    %v521 = vsub.s32 0, %v520
    %v522 = vrot.slane %v95, %v521
    %v523 = vmul.f32 %v350, %v522
    %v524 = vmul.f32 %v351, %v522
    %v525 = vmul.f32 %v352, %v522
    %v526 = vmul.f32 %v353, %v522
    %527 = vadd.xlane.f32.xlu0 %v523
    %v528 = vpop.xlane.xlu0 %527
    %529 = vadd.xlane.f32.xlu0 %v524
    %v530 = vpop.xlane.xlu0 %529
    %531 = vadd.xlane.f32.xlu0 %v525
    %v532 = vpop.xlane.xlu0 %531
    %533 = vadd.xlane.f32.xlu0 %v526
    %v534 = vpop.xlane.xlu0 %533
    %v535 = vlaneseq
    %v536 = vshrl.u32 %v535, 7
    %v537 = vsub.s32 0, %v536
    %v538 = vrot.slane %v96, %v537
    %v539 = vmul.f32 %v392, %v538
    %v540 = vmul.f32 %v393, %v538
    %v541 = vlaneseq
    %v542 = vshrl.u32 %v541, 7
    %v543 = vsub.s32 0, %v542
    %v544 = vrot.slane %v97, %v543
    %v545 = vadd.f32 %v539, %v544
    %v546 = vadd.f32 %v540, %v544
    %v549 = vrot.slane %v546, 7
    %v550 = vsel %vm421, %v549, %v545
    %vm552 = vcmask 1041408
    %v553 = vsel %vm552, %v550, 0.0
    %554 = vadd.xlane.f32.xlu0 %v553
    %v555 = vpop.xlane.xlu0 %554
    %v557 = vlaneseq
    %v558 = vshrl.u32 %v557, 7
    %v559 = vsub.s32 0, %v558
    %v560 = vrot.slane %v555, %v559
    %v561 = vlaneseq
    %v562 = vshrl.u32 %v561, 7
    %v563 = vsub.s32 1, %v562
    %v564 = vrot.slane %v555, %v563
    %v567 = vadd.f32 %v528, %v560
    %v568 = vadd.f32 %v530, %v560
    %v569 = vadd.f32 %v532, %v564
    %v570 = vadd.f32 %v534, %v564
    %v571 = vxor.u32 %v567, 2147483648
    %v572 = vxor.u32 %v568, 2147483648
    %v573 = vxor.u32 %v569, 2147483648
    %v574 = vxor.u32 %v570, 2147483648
    %v575 = vmul.f32 %v571, 1.442695
    %v576 = vpow.pop %v575
    %v577 = vmul.f32 %v572, 1.442695
    %v578 = vpow.pop %v577
    %v579 = vmul.f32 %v573, 1.442695
    %v580 = vpow.pop %v579
    %v581 = vmul.f32 %v574, 1.442695
    %v582 = vpow.pop %v581
    %v583 = vadd.f32 %v576, 1.0
    %v584 = vadd.f32 %v578, 1.0
    %v585 = vadd.f32 %v580, 1.0
    %v586 = vadd.f32 %v582, 1.0
    %v587 = vrcp.pop %v583
    %v588 = vmul.f32 1.0, %v587
    %v589 = vrcp.pop %v584
    %v590 = vmul.f32 1.0, %v589
    %v591 = vrcp.pop %v585
    %v592 = vmul.f32 1.0, %v591
    %v593 = vrcp.pop %v586
    %v594 = vmul.f32 1.0, %v593
    %v597 = vunpack.c.l.s4 1966171168
    %v598 = vunpack.c.0.s8 %v597
    %v599 = vlaneseq
    %v600 = vshrl.u32 %v599, 7
    %v601 = vsub.s32 %v598, %v600
    %v602 = vrot.slane %v518, %v601
    %v603 = vcombine.high %v602, %v602
    %v605 = vunpack.c.l.s4 1966171168
    %v606 = vunpack.c.0.s8 %v605
    %v607 = vlaneseq
    %v608 = vshrl.u32 %v607, 7
    %v609 = vsub.s32 %v606, %v608
    %v610 = vrot.slane %v602, %v609
    %v612 = vunpack.c.l.s4 1966171168
    %v613 = vunpack.c.0.s8 %v612
    %v614 = vlaneseq
    %v615 = vshrl.u32 %v614, 7
    %v616 = vsub.s32 %v613, %v615
    %v617 = vrot.slane %v603, %v616
    %v618 = vlaneseq
    %v619 = vshrl.u32 %v618, 7
    %v620 = vsub.s32 0, %v619
    %v621 = vrot.slane %v610, %v620
    %v622 = vlaneseq
    %v623 = vshrl.u32 %v622, 7
    %v624 = vsub.s32 0, %v623
    %v625 = vrot.slane %v617, %v624
    %v628 = vmul.f32 %v621, %v588
    %v629 = vmul.f32 %v621, %v590
    %v630 = vmul.f32 %v625, %v592
    %v631 = vmul.f32 %v625, %v594
    %v632 = vmul.f32 %v86, %v628
    %v633 = vmul.f32 %v87, %v629
    %v634 = vmul.f32 %v88, %v630
    %v635 = vmul.f32 %v89, %v631
    %636 = vst [vmem:[#allocation11] sm:$0xff] %v632
    %637 = vst [vmem:[#allocation11 + $0x8] sm:$0xff] %v633
    %638 = vst [vmem:[#allocation11 + $0x10] sm:$0xff] %v634
    %639 = vst [vmem:[#allocation11 + $0x18] sm:$0xff] %v635
    // Predicated region
    $region42: #{tpu_custom_call.1} parent=1 // pred_check
      _
    $region43: #{tpu_custom_call.1} parent=1 // pred_check_branch
      %641 = sbr.rel (0) target = $region45
    $region44: #{tpu_custom_call.1} parent=1 // pred_region
      %s643 = ssub.s32 512, 512
      %644 = vsyncadd [#allocation4], %s643
      %s645 = sshll.u32 [#allocation11], 4
      %s646 = int_to_ptr.vmem [resolvable:$true] %s645
      %651 = dma.vmem_to_hbm [thread:$0]  %s646, 512, %s5, [#allocation4], 128, 128, 8
    $region45: #{tpu_custom_call.1} parent=1 // pred_fallthru
      _
    // Predicated region
    $region46: #{tpu_custom_call.1} parent=1 // pred_check
      _
    $region47: #{tpu_custom_call.1} parent=1 // pred_check_branch
      %653 = sbr.rel (0) target = $region49
    $region48: #{tpu_custom_call.1} parent=1 // pred_region
      %654 = dma.done [#allocation4], 512
    $region49: #{tpu_custom_call.1} parent=1 // pred_fallthru
      _
    %655 = vsyncpa [#allocation3], 1
    %656 = vsyncpa [#allocation6], 1
    %657 = vsyncpa [#allocation9], 1
    %658 = vsyncpa [#allocation4], 1

</llo_original>
